<compile_context>
chip_gen: v7x
topology: tpu7x:2x2x1
jax: 0.10.0
libtpu: 0.0.40
codegen_flags: <defaults>
</compile_context>

<pallas_src>
import functools

import jax
import jax.numpy as jnp
from jax.experimental import pallas as pl
from jax.experimental.pallas import tpu as pltpu


def _round_up(a, b):
    return (a + b - 1) // b * b


def highway_kernel(x_ref, w_ref, b_ref, o_ref, *, h_pad):
    x = x_ref[...]                                                # (tm, Hp)  f32
    # one fused matmul against [Wt | Wg] -> (tm, 2*Hp), f32 accumulation
    z = jnp.dot(x.astype(w_ref.dtype), w_ref[...],
                preferred_element_type=jnp.float32) + b_ref[...]
    tran = jnp.maximum(z[:, :h_pad], 0.0)                         # relu branch
    gate = jax.nn.sigmoid(z[:, h_pad:])                           # gate branch (EUP)
    # gate*tran + (1-gate)*x  ==  x + gate*(tran - x)
    o_ref[...] = (x + gate * (tran - x)).astype(o_ref.dtype)


def highway_forward(x, wt, bt, wg, bg, *, tm_max=512, matmul_dtype=jnp.bfloat16):
    """x: (rows, H) float32.  wt/wg: (H, H) pre-transposed (in, out).  bt/bg: (1, H)."""
    rows, H = x.shape
    Hp = _round_up(H, 128)                  # lane-dense hidden
    rows8 = _round_up(rows, 8)              # sublane alignment
    tm = min(tm_max, rows8)                 # large row tile (multiple of 8)
    rows_p = _round_up(rows8, tm)

    # pack + pad weights/biases: [Wt | Wg] -> (Hp, 2*Hp), [bt | bg] -> (1, 2*Hp)
    wtp = jnp.pad(wt, ((0, Hp - H), (0, Hp - H))).astype(matmul_dtype)
    wgp = jnp.pad(wg, ((0, Hp - H), (0, Hp - H))).astype(matmul_dtype)
    w = jnp.concatenate([wtp, wgp], axis=1)                       # (Hp, 2*Hp)
    btp = jnp.pad(bt.astype(jnp.float32), ((0, 0), (0, Hp - H)))
    bgp = jnp.pad(bg.astype(jnp.float32), ((0, 0), (0, Hp - H)))
    b = jnp.concatenate([btp, bgp], axis=1)                       # (1, 2*Hp)

    xp = jnp.pad(x, ((0, rows_p - rows), (0, Hp - H)))            # (rows_p, Hp)

    grid = (rows_p // tm,)
    w_bytes = Hp * 2 * Hp * jnp.dtype(matmul_dtype).itemsize
    cost = pl.CostEstimate(
        flops=4 * rows_p * Hp * Hp,                 # two H x H matmuls fused
        transcendentals=rows_p * Hp,                # sigmoid exps
        bytes_accessed=2 * rows_p * Hp * 4 + w_bytes + 2 * Hp * 4,
    )

    out = pl.pallas_call(
        functools.partial(highway_kernel, h_pad=Hp),
        out_shape=jax.ShapeDtypeStruct((rows_p, Hp), x.dtype),
        grid_spec=pltpu.PrefetchScalarGridSpec(
            num_scalar_prefetch=0,
            grid=grid,
            in_specs=[
                pl.BlockSpec((tm, Hp), lambda i: (i, 0)),         # x tile
                pl.BlockSpec((Hp, 2 * Hp), lambda i: (0, 0)),     # fused [Wt|Wg]
                pl.BlockSpec((1, 2 * Hp), lambda i: (0, 0)),      # fused [bt|bg]
            ],
            out_specs=pl.BlockSpec((tm, Hp), lambda i: (i, 0)),
        ),
        compiler_params=pltpu.CompilerParams(
            dimension_semantics=("parallel",),
            vmem_limit_bytes=64 * 1024 * 1024,
        ),
        cost_estimate=cost,
    )(xp, w, b)
    return out[:rows, :H]


def highway_ref(x, wt, bt, wg, bg):
    tran = jnp.maximum(x @ wt + bt, 0.0)
    gate = jax.nn.sigmoid(x @ wg + bg)
    return gate * tran + (1.0 - gate) * x


if __name__ == "__main__":
    batch, seq, hidden = 2, 8, 32
    rows = batch * seq

    key = jax.random.PRNGKey(0)
    kx, kwt, kbt, kwg, kbg = jax.random.split(key, 5)

    bound = 1.0 / jnp.sqrt(jnp.float32(hidden))
    x = jax.random.normal(kx, (batch, seq, hidden), dtype=jnp.float32)
    wt = jax.random.uniform(kwt, (hidden, hidden), jnp.float32, -bound, bound)
    bt = jax.random.uniform(kbt, (1, hidden), jnp.float32, -bound, bound)
    wg = jax.random.uniform(kwg, (hidden, hidden), jnp.float32, -bound, bound)
    bg = jax.random.uniform(kbg, (1, hidden), jnp.float32, -bound, bound)

    x2d = x.reshape(rows, hidden)
    ref = highway_ref(x2d, wt, bt, wg, bg)

    # exactness check (f32 matmul path)
    out_f32 = jax.block_until_ready(
        highway_forward(x2d, wt, bt, wg, bg, matmul_dtype=jnp.float32))
    assert out_f32.shape == (rows, hidden)
    assert jnp.allclose(out_f32, ref, atol=1e-5, rtol=1e-5), "f32 mismatch vs reference"

    # default fast path (bf16 matmul, f32 accumulation + elementwise)
    out = jax.block_until_ready(highway_forward(x2d, wt, bt, wg, bg))
    assert out.shape == (rows, hidden)
    assert jnp.allclose(out, ref, atol=5e-2, rtol=5e-2), "bf16 mismatch vs reference"

    # reshape back to the PyTorch-style (B, S, H) output
    _ = out.reshape(batch, seq, hidden)
    print("KERNEL_OK")
</pallas_src>

<mosaic_0001>
module attributes {stable_mosaic.version = 11 : i64} {
  func.func @highway_kernel(%arg0: i32, %arg1: memref<16x128xf32, #tpu.memory_space<vmem>>, %arg2: memref<128x256xf32, #tpu.memory_space<vmem>>, %arg3: memref<1x256xf32, #tpu.memory_space<vmem>>, %arg4: memref<16x128xf32, #tpu.memory_space<vmem>>) attributes {dimension_semantics = [#tpu.dimension_semantics<parallel>], iteration_bounds = array<i64: 1>, scalar_prefetch = 0 : i64, scratch_operands = 0 : i64, tpu.core_type = #tpu.core_type<tc>, window_params = [{transform_indices = @transform_0, window_bounds = array<i64: 16, 128>}, {pipeline_mode = #tpu.pipeline_mode<synchronous>, transform_indices = @transform_1, window_bounds = array<i64: 128, 256>}, {pipeline_mode = #tpu.pipeline_mode<synchronous>, transform_indices = @transform_2, window_bounds = array<i64: 1, 256>}, {transform_indices = @transform_3, window_bounds = array<i64: 16, 128>}]} {
    %c0 = arith.constant 0 : index
    %c0_0 = arith.constant 0 : index
    %0 = vector.load %arg1[%c0, %c0_0] : memref<16x128xf32, #tpu.memory_space<vmem>>, vector<16x128xf32>
    %c0_1 = arith.constant 0 : index
    %c0_2 = arith.constant 0 : index
    %1 = vector.load %arg2[%c0_1, %c0_2] : memref<128x256xf32, #tpu.memory_space<vmem>>, vector<128x256xf32>
    %cst = arith.constant dense<0.000000e+00> : vector<16x256xf32>
    %2 = tpu.matmul %0, %1, %cst {dimension_numbers = #tpu.dot_dimension_numbers<[1], [0], [0], [1], [0, 0, 1, 1], [], []>} : vector<16x128xf32>, vector<128x256xf32>, vector<16x256xf32> -> vector<16x256xf32>
    %c0_3 = arith.constant 0 : index
    %c0_4 = arith.constant 0 : index
    %3 = vector.load %arg3[%c0_3, %c0_4] : memref<1x256xf32, #tpu.memory_space<vmem>>, vector<1x256xf32>
    %4 = vector.broadcast %3 : vector<1x256xf32> to vector<16x256xf32>
    %5 = arith.addf %2, %4 : vector<16x256xf32>
    %6 = vector.extract_strided_slice %5 {offsets = [0, 0], sizes = [16, 128], strides = [1, 1]} : vector<16x256xf32> to vector<16x128xf32>
    %cst_5 = arith.constant 0.000000e+00 : f32
    %7 = vector.broadcast %cst_5 : f32 to vector<16x128xf32>
    %8 = arith.maximumf %6, %7 : vector<16x128xf32>
    %9 = vector.extract_strided_slice %5 {offsets = [0, 128], sizes = [16, 128], strides = [1, 1]} : vector<16x256xf32> to vector<16x128xf32>
    %10 = arith.negf %9 : vector<16x128xf32>
    %11 = math.exp %10 : vector<16x128xf32>
    %cst_6 = arith.constant 1.000000e+00 : f32
    %12 = vector.broadcast %cst_6 : f32 to vector<16x128xf32>
    %13 = arith.addf %12, %11 : vector<16x128xf32>
    %14 = arith.divf %12, %13 : vector<16x128xf32>
    %15 = arith.subf %8, %0 : vector<16x128xf32>
    %16 = arith.mulf %14, %15 : vector<16x128xf32>
    %17 = arith.addf %0, %16 : vector<16x128xf32>
    %c0_7 = arith.constant 0 : index
    %c0_8 = arith.constant 0 : index
    %18 = vector.load %arg4[%c0_7, %c0_8] : memref<16x128xf32, #tpu.memory_space<vmem>>, vector<16x128xf32>
    tpu.vector_store %arg4[%c0_7, %c0_8], %17 {strides = array<i32>} : memref<16x128xf32, #tpu.memory_space<vmem>>, vector<16x128xf32>,
    return
  }
  func.func @transform_0(%arg0: i32) -> (i32, i32) {
    %c0_i32 = arith.constant 0 : i32
    %c0_i32_0 = arith.constant 0 : i32
    return %arg0, %c0_i32 : i32, i32
  }
  func.func @transform_1(%arg0: i32) -> (i32, i32) {
    %c0_i32 = arith.constant 0 : i32
    %c0_i32_0 = arith.constant 0 : i32
    %c0_i32_1 = arith.constant 0 : i32
    return %c0_i32, %c0_i32_0 : i32, i32
  }
  func.func @transform_2(%arg0: i32) -> (i32, i32) {
    %c0_i32 = arith.constant 0 : i32
    %c0_i32_0 = arith.constant 0 : i32
    %c0_i32_1 = arith.constant 0 : i32
    return %c0_i32, %c0_i32_0 : i32, i32
  }
  func.func @transform_3(%arg0: i32) -> (i32, i32) {
    %c0_i32 = arith.constant 0 : i32
    %c0_i32_0 = arith.constant 0 : i32
    return %arg0, %c0_i32 : i32, i32
  }
}

</mosaic_0001>

<llo_original>
// kernel: tpu_custom_call.1
$region0: #{tpu_custom_call.1}
  #allocation0 [shape = 'u32[]', space=smem, size = 0x4, offset = 0x4, fixed_abs, tag = 'smem constant byte address 0x4 - core index']
  #allocation1 [shape = 'u32[144,128]{1,0:T(1,128)}', space=vmem, size = 0x12000, scoped, tag = 'internal scratch']
  %s0 = inlined_call_operand.hbm [shape: f32[16,128], index: 0, kind: input, shape index: {}]
  %s1 = inlined_call_operand.hbm [shape: f32[128,256], index: 1, kind: input, shape index: {}]
  %s2 = inlined_call_operand.hbm [shape: f32[1,256], index: 2, kind: input, shape index: {}]
  %s3 = inlined_call_operand.hbm [shape: f32[16,128], index: 3, kind: output, shape index: {}]
  %s4 = sld [smem:[#allocation0]]
  $region34: #{tpu_custom_call.1} parent=0
    _
  %s6 = ssub.s32 1, %s4
  %s7 = scalar_select 0, %s6, %s4
  $region1: #{tpu_custom_call.1} parent=0
    #allocation2 [shape = 'u8[8192]{0}', space=vmem, size = 0x2000, scoped, tag = 'input window, operand 0, single buffered']
    #allocation3 [shape = 's32[1]{0}', space=sflag, size = 0x4, scoped, tag = 'scoped memory for tpu_custom_call.1']
    #allocation4 [shape = 's32[1]{0}', space=sflag, size = 0x4, scoped, tag = 'scoped memory for tpu_custom_call.1']
    #allocation5 [shape = 'u8[131072]{0}', space=vmem, size = 0x20000, scoped, tag = 'input window, operand 1, single buffered']
    #allocation6 [shape = 's32[1]{0}', space=sflag, size = 0x4, scoped, tag = 'scoped memory for tpu_custom_call.1']
    #allocation7 [shape = 'u8[1024]{0}', space=vmem, size = 0x400, scoped, tag = 'input window, operand 2, single buffered']
    #allocation8 [shape = 'u8[8192]{0}', space=vmem, size = 0x2000, scoped, tag = 'output window, operand 0, single buffered']
    %8 = vsyncpa [#allocation3], 0
    %9 = vsyncpa [#allocation6], 0
    %10 = vsyncpa [#allocation4], 0
    // Predicated region
    $region2: #{tpu_custom_call.1} parent=1 // pred_check
      _
    $region3: #{tpu_custom_call.1} parent=1 // pred_check_branch
      %12 = sbr.rel (0) target = $region5
    $region4: #{tpu_custom_call.1} parent=1 // pred_region
      %s14 = ssub.s32 256, 256
      %15 = vsyncadd [#allocation3], %s14
      %s16 = sshll.u32 [#allocation2], 4
      %s17 = int_to_ptr.vmem [resolvable:$true] %s16
      %22 = dma.hbm_to_vmem [thread:$0]  %s0, 256, %s17, [#allocation3], 128, 128, 8
    $region5: #{tpu_custom_call.1} parent=1 // pred_fallthru
      _
    // Predicated region
    $region6: #{tpu_custom_call.1} parent=1 // pred_check
      _
    $region7: #{tpu_custom_call.1} parent=1 // pred_check_branch
      %24 = sbr.rel (0) target = $region9
    $region8: #{tpu_custom_call.1} parent=1 // pred_region
      %s26 = ssub.s32 4096, 4096
      %27 = vsyncadd [#allocation6], %s26
      %s28 = sshll.u32 [#allocation5], 4
      %s29 = int_to_ptr.vmem [resolvable:$true] %s28
      %34 = dma.hbm_to_vmem [thread:$0]  %s1, 4096, %s29, [#allocation6], 256, 256, 16
    $region9: #{tpu_custom_call.1} parent=1 // pred_fallthru
      _
    // Predicated region
    $region10: #{tpu_custom_call.1} parent=1 // pred_check
      _
    $region11: #{tpu_custom_call.1} parent=1 // pred_check_branch
      %36 = sbr.rel (0) target = $region13
    $region12: #{tpu_custom_call.1} parent=1 // pred_region
      %s38 = ssub.s32 32, 32
      %39 = vsyncadd [#allocation6], %s38
      %s41 = sshll.u32 [#allocation7], 4
      %s42 = int_to_ptr.vmem [resolvable:$true] %s41
      %44 = dma.hbm_to_vmem [thread:$0]  %s2, 32, %s42, [#allocation6]
    $region13: #{tpu_custom_call.1} parent=1 // pred_fallthru
      _
    // Predicated region
    $region14: #{tpu_custom_call.1} parent=1 // pred_check
      _
    $region15: #{tpu_custom_call.1} parent=1 // pred_check_branch
      %46 = sbr.rel (0) target = $region17
    $region16: #{tpu_custom_call.1} parent=1 // pred_region
      %47 = dma.done [#allocation3], 256
    $region17: #{tpu_custom_call.1} parent=1 // pred_fallthru
      _
    // Predicated region
    $region18: #{tpu_custom_call.1} parent=1 // pred_check
      _
    $region19: #{tpu_custom_call.1} parent=1 // pred_check_branch
      %49 = sbr.rel (0) target = $region21
    $region20: #{tpu_custom_call.1} parent=1 // pred_region
      %50 = dma.done [#allocation6], 4096
    $region21: #{tpu_custom_call.1} parent=1 // pred_fallthru
      _
    // Predicated region
    $region22: #{tpu_custom_call.1} parent=1 // pred_check
      _
    $region23: #{tpu_custom_call.1} parent=1 // pred_check_branch
      %52 = sbr.rel (0) target = $region25
    $region24: #{tpu_custom_call.1} parent=1 // pred_region
      %53 = dma.done [#allocation6], 32
    $region25: #{tpu_custom_call.1} parent=1 // pred_fallthru
      _
    %v54 = vld [vmem:[#allocation2] sm:$0xff]
    %v55 = vld [vmem:[#allocation2 + $0x8] sm:$0xff]
    %v56 = vld [vmem:[#allocation5] sm:$0xff]
    %v57 = vld [vmem:[#allocation5 + $0x8] sm:$0xff]
    %v58 = vld [vmem:[#allocation5 + $0x10] sm:$0xff]
    %v59 = vld [vmem:[#allocation5 + $0x18] sm:$0xff]
    %v60 = vld [vmem:[#allocation5 + $0x20] sm:$0xff]
    %v61 = vld [vmem:[#allocation5 + $0x28] sm:$0xff]
    %v62 = vld [vmem:[#allocation5 + $0x30] sm:$0xff]
    %v63 = vld [vmem:[#allocation5 + $0x38] sm:$0xff]
    %v64 = vld [vmem:[#allocation5 + $0x40] sm:$0xff]
    %v65 = vld [vmem:[#allocation5 + $0x48] sm:$0xff]
    %v66 = vld [vmem:[#allocation5 + $0x50] sm:$0xff]
    %v67 = vld [vmem:[#allocation5 + $0x58] sm:$0xff]
    %v68 = vld [vmem:[#allocation5 + $0x60] sm:$0xff]
    %v69 = vld [vmem:[#allocation5 + $0x68] sm:$0xff]
    %v70 = vld [vmem:[#allocation5 + $0x70] sm:$0xff]
    %v71 = vld [vmem:[#allocation5 + $0x78] sm:$0xff]
    %v72 = vld [vmem:[#allocation5 + $0x80] sm:$0xff]
    %v73 = vld [vmem:[#allocation5 + $0x88] sm:$0xff]
    %v74 = vld [vmem:[#allocation5 + $0x90] sm:$0xff]
    %v75 = vld [vmem:[#allocation5 + $0x98] sm:$0xff]
    %v76 = vld [vmem:[#allocation5 + $0xa0] sm:$0xff]
    %v77 = vld [vmem:[#allocation5 + $0xa8] sm:$0xff]
    %v78 = vld [vmem:[#allocation5 + $0xb0] sm:$0xff]
    %v79 = vld [vmem:[#allocation5 + $0xb8] sm:$0xff]
    %v80 = vld [vmem:[#allocation5 + $0xc0] sm:$0xff]
    %v81 = vld [vmem:[#allocation5 + $0xc8] sm:$0xff]
    %v82 = vld [vmem:[#allocation5 + $0xd0] sm:$0xff]
    %v83 = vld [vmem:[#allocation5 + $0xd8] sm:$0xff]
    %v84 = vld [vmem:[#allocation5 + $0xe0] sm:$0xff]
    %v85 = vld [vmem:[#allocation5 + $0xe8] sm:$0xff]
    %v86 = vld [vmem:[#allocation5 + $0xf0] sm:$0xff]
    %v87 = vld [vmem:[#allocation5 + $0xf8] sm:$0xff]
    %v88 = vld [vmem:[#allocation7] sm:$0x3]
    %v90 = vlaneseq
    %v91 = vshrl.u32 %v90, 7
    %v92 = vsub.s32 0, %v91
    %v93 = vrot.slane %v88, %v92
    %v94 = vlaneseq
    %v95 = vshrl.u32 %v94, 7
    %v96 = vsub.s32 1, %v95
    %v97 = vrot.slane %v88, %v96
    %100 = vmatprep.subr.mxu0 %v57
    %101 = vmatpush1.msra.mxu0 %v56
    %102 = vmatprep.subr.mxu0 %v59
    %103 = vmatpush1.msra.mxu0 %v58
    %104 = vmatprep.subr.mxu0 %v61
    %105 = vmatpush1.msra.mxu0 %v60
    %106 = vmatprep.subr.mxu0 %v63
    %107 = vmatpush1.msra.mxu0 %v62
    %108 = vmatprep.subr.mxu0 %v65
    %109 = vmatpush1.msra.mxu0 %v64
    %110 = vmatprep.subr.mxu0 %v67
    %111 = vmatpush1.msra.mxu0 %v66
    %112 = vmatprep.subr.mxu0 %v69
    %113 = vmatpush1.msra.mxu0 %v68
    %114 = vmatprep.subr.mxu0 %v71
    %115 = vmatpush1.msra.mxu0 %v70
    %116 = vmatprep.subr.mxu0 %v73
    %117 = vmatpush1.msra.mxu0 %v72
    %118 = vmatprep.subr.mxu0 %v75
    %119 = vmatpush1.msra.mxu0 %v74
    %120 = vmatprep.subr.mxu0 %v77
    %121 = vmatpush1.msra.mxu0 %v76
    %122 = vmatprep.subr.mxu0 %v79
    %123 = vmatpush1.msra.mxu0 %v78
    %124 = vmatprep.subr.mxu0 %v81
    %125 = vmatpush1.msra.mxu0 %v80
    %126 = vmatprep.subr.mxu0 %v83
    %127 = vmatpush1.msra.mxu0 %v82
    %128 = vmatprep.subr.mxu0 %v85
    %129 = vmatpush1.msra.mxu0 %v84
    %130 = vmatprep.subr.mxu0 %v87
    %131 = vmatpush1.msra.mxu0 %v86
    %132 = vmatprep.subr.mxu0 0.0
    %133 = vmatpush1.msra.mxu0 0.0
    %134 = vmatprep.subr.mxu0 0.0
    %135 = vmatpush1.msra.mxu0 0.0
    %136 = vmatprep.subr.mxu0 0.0
    %137 = vmatpush1.msra.mxu0 0.0
    %138 = vmatprep.subr.mxu0 0.0
    %139 = vmatpush1.msra.mxu0 0.0
    %140 = vmatprep.subr.mxu0 0.0
    %141 = vmatpush1.msra.mxu0 0.0
    %142 = vmatprep.subr.mxu0 0.0
    %143 = vmatpush1.msra.mxu0 0.0
    %144 = vmatprep.subr.mxu0 0.0
    %145 = vmatpush1.msra.mxu0 0.0
    %146 = vmatprep.subr.mxu0 0.0
    %147 = vmatpush1.msra.mxu0 0.0
    %148 = vmatprep.subr.mxu0 0.0
    %149 = vmatpush1.msra.mxu0 0.0
    %150 = vmatprep.subr.mxu0 0.0
    %151 = vmatpush1.msra.mxu0 0.0
    %152 = vmatprep.subr.mxu0 0.0
    %153 = vmatpush1.msra.mxu0 0.0
    %154 = vmatprep.subr.mxu0 0.0
    %155 = vmatpush1.msra.mxu0 0.0
    %156 = vmatprep.subr.mxu0 0.0
    %157 = vmatpush1.msra.mxu0 0.0
    %158 = vmatprep.subr.mxu0 0.0
    %159 = vmatpush1.msra.mxu0 0.0
    %160 = vmatprep.subr.mxu0 0.0
    %161 = vmatpush1.msra.mxu0 0.0
    %162 = vmatprep.subr.mxu0 0.0
    %163 = vmatpush1.msra.mxu0 0.0
    %164 = vmatprep.mubr.f32.mxu0 0.0
    %165 = vmatmul.mubr.f32.gmra.mrb[0].mxu0 %v54
    %v166 = vpop.f32.mrb[0].mxu0
    %v167 = vadd.f32 %v93, %v166
    %v168 = vpop.f32.mrb[0].mxu0
    %v169 = vadd.f32 %v97, %v168
    %170 = vmatprep.mubr.f32.mxu0 0.0
    %171 = vmatmul.mubr.f32.gmra.mrb[0].mxu0 %v55
    %v172 = vpop.f32.mrb[0].mxu0
    %v173 = vadd.f32 %v93, %v172
    %v174 = vpop.f32.mrb[0].mxu0
    %v175 = vadd.f32 %v97, %v174
    %176 = vdwg.mxu0
    %v177 = vmax.f32 %v167, 0.0
    %v178 = vmax.f32 %v173, 0.0
    %v179 = vxor.u32 %v169, 2147483648
    %v180 = vxor.u32 %v175, 2147483648
    %v181 = vmul.f32 %v179, 1.442695
    %v182 = vpow.pop %v181
    %v183 = vmul.f32 %v180, 1.442695
    %v184 = vpow.pop %v183
    %v185 = vadd.f32 %v182, 1.0
    %v186 = vadd.f32 %v184, 1.0
    %v187 = vrcp.pop %v185
    %v188 = vmul.f32 1.0, %v187
    %v189 = vrcp.pop %v186
    %v190 = vmul.f32 1.0, %v189
    %v191 = vsub.f32 %v177, %v54
    %v192 = vsub.f32 %v178, %v55
    %v193 = vmul.f32 %v188, %v191
    %v194 = vmul.f32 %v190, %v192
    %v195 = vadd.f32 %v54, %v193
    %v196 = vadd.f32 %v55, %v194
    %197 = vst [vmem:[#allocation8] sm:$0xff] %v195
    %198 = vst [vmem:[#allocation8 + $0x8] sm:$0xff] %v196
    // Predicated region
    $region26: #{tpu_custom_call.1} parent=1 // pred_check
      _
    $region27: #{tpu_custom_call.1} parent=1 // pred_check_branch
      %200 = sbr.rel (0) target = $region29
    $region28: #{tpu_custom_call.1} parent=1 // pred_region
      %s202 = ssub.s32 256, 256
      %203 = vsyncadd [#allocation4], %s202
      %s204 = sshll.u32 [#allocation8], 4
      %s205 = int_to_ptr.vmem [resolvable:$true] %s204
      %210 = dma.vmem_to_hbm [thread:$0]  %s205, 256, %s3, [#allocation4], 128, 128, 8
    $region29: #{tpu_custom_call.1} parent=1 // pred_fallthru
      _
    // Predicated region
    $region30: #{tpu_custom_call.1} parent=1 // pred_check
      _
    $region31: #{tpu_custom_call.1} parent=1 // pred_check_branch
      %212 = sbr.rel (0) target = $region33
    $region32: #{tpu_custom_call.1} parent=1 // pred_region
      %213 = dma.done [#allocation4], 256
    $region33: #{tpu_custom_call.1} parent=1 // pred_fallthru
      _
    %214 = vsyncpa [#allocation3], 1
    %215 = vsyncpa [#allocation6], 1
    %216 = vsyncpa [#allocation4], 1

</llo_original>
